<compile_context>
chip_gen: v5e
topology: v5e:2x2
jax: 0.10.0
libtpu: 0.0.40
codegen_flags: <defaults>
</compile_context>

<pallas_src>
import functools

import jax
import jax.numpy as jnp
from jax.experimental import pallas as pl
from jax.experimental.pallas import tpu as pltpu


def _round_up(n: int, m: int) -> int:
    return ((n + m - 1) // m) * m


def _pad2(a, rows, cols):
    r, c = a.shape
    return jnp.pad(a, ((0, rows - r), (0, cols - c)))


def vae_kernel(x_ref, eps_ref,
               w1_ref, b1_ref,            # img_to_hid           (IN_P, HID_P)
               wms_ref, bms_ref,          # fused mean|std heads (HID_P, 2*Z_P)
               wz_ref, bz_ref,            # z_to_hid             (Z_P, HID_P)
               wo_ref, bo_ref,            # hid_to_img           (HID_P, IN_P)
               xrec_ref, mu_ref, std_ref):
    x = x_ref[...]
    eps = eps_ref[...]
    zp = eps.shape[1]                      # padded latent width (multiple of 128)

    # ---- encode ----
    h = jnp.dot(x, w1_ref[...], preferred_element_type=jnp.float32) + b1_ref[...]
    h = jnp.maximum(h, 0.0)                # ReLU
    ms = jnp.dot(h, wms_ref[...], preferred_element_type=jnp.float32) + bms_ref[...]
    mu = ms[:, :zp]                        # lane-aligned split of the fused head
    std = ms[:, zp:]

    # ---- reparameterize ----  (padded lanes of mu/std are exactly zero by construction)
    z = mu + eps * std

    # ---- decode ----
    h2 = jnp.dot(z, wz_ref[...], preferred_element_type=jnp.float32) + bz_ref[...]
    h2 = jnp.maximum(h2, 0.0)              # ReLU
    logits = jnp.dot(h2, wo_ref[...], preferred_element_type=jnp.float32) + bo_ref[...]
    xrec_ref[...] = jax.nn.sigmoid(logits)  # EUP transcendental path, not an explicit divide

    mu_ref[...] = mu
    std_ref[...] = std


@functools.partial(jax.jit, static_argnames=("tile_b",))
def vae_forward(x, eps, params, *, tile_b=128):
    """x: (B, input_dim) f32, eps: (B, z_dim) f32, params: dict of (in,out) weights / (1,out) biases."""
    B, input_dim = x.shape
    z_dim = eps.shape[1]
    hid_dim = params["w1"].shape[1]

    # ---- padded (lane-aligned) problem sizes ----
    IN_P = _round_up(input_dim, 128)
    HID_P = _round_up(hid_dim, 128)
    Z_P = _round_up(z_dim, 128)

    tile_b = _round_up(max(8, min(tile_b, B)), 8)
    B_P = _round_up(B, tile_b)
    n_tiles = B_P // tile_b

    # ---- zero-padded operands (zeros keep padded lanes inert through the whole network) ----
    xp = _pad2(x, B_P, IN_P)
    epsp = _pad2(eps, B_P, Z_P)

    w1p = _pad2(params["w1"], IN_P, HID_P)
    b1p = _pad2(params["b1"], 1, HID_P)
    # fused mean|std head: (HID_P, 2*Z_P), cols [0, Z_P) -> mean, [Z_P, 2*Z_P) -> std
    wms = jnp.concatenate([_pad2(params["wm"], HID_P, Z_P),
                           _pad2(params["ws"], HID_P, Z_P)], axis=1)
    bms = jnp.concatenate([_pad2(params["bm"], 1, Z_P),
                           _pad2(params["bs"], 1, Z_P)], axis=1)
    wzp = _pad2(params["wz"], Z_P, HID_P)
    bzp = _pad2(params["bz"], 1, HID_P)
    wop = _pad2(params["wo"], HID_P, IN_P)
    bop = _pad2(params["bo"], 1, IN_P)

    # ---- cost hint for the XLA scheduler ----
    flops = 2 * B_P * (IN_P * HID_P + HID_P * 2 * Z_P + Z_P * HID_P + HID_P * IN_P)
    transcendentals = B_P * IN_P  # sigmoid
    bytes_accessed = 4 * (B_P * (IN_P + Z_P)                                   # x, eps
                          + IN_P * HID_P + HID_P * 2 * Z_P + Z_P * HID_P
                          + HID_P * IN_P + 2 * HID_P + 2 * Z_P + IN_P          # weights + biases
                          + B_P * (IN_P + 2 * Z_P))                            # outputs
    cost = pl.CostEstimate(flops=flops, transcendentals=transcendentals,
                           bytes_accessed=bytes_accessed)

    xrec_p, mu_p, std_p = pl.pallas_call(
        vae_kernel,
        out_shape=(
            jax.ShapeDtypeStruct((B_P, IN_P), jnp.float32),   # x_reconstructed (padded)
            jax.ShapeDtypeStruct((B_P, Z_P), jnp.float32),    # mu  (padded, lane-dense)
            jax.ShapeDtypeStruct((B_P, Z_P), jnp.float32),    # std (padded, lane-dense)
        ),
        grid_spec=pltpu.PrefetchScalarGridSpec(
            num_scalar_prefetch=0,
            grid=(n_tiles,),
            in_specs=[
                pl.BlockSpec((tile_b, IN_P), lambda i: (i, 0)),        # x   (batch-blocked)
                pl.BlockSpec((tile_b, Z_P), lambda i: (i, 0)),         # eps (batch-blocked)
                pl.BlockSpec((IN_P, HID_P), lambda i: (0, 0)),         # w1  (resident)
                pl.BlockSpec((1, HID_P), lambda i: (0, 0)),            # b1
                pl.BlockSpec((HID_P, 2 * Z_P), lambda i: (0, 0)),      # wms
                pl.BlockSpec((1, 2 * Z_P), lambda i: (0, 0)),          # bms
                pl.BlockSpec((Z_P, HID_P), lambda i: (0, 0)),          # wz
                pl.BlockSpec((1, HID_P), lambda i: (0, 0)),            # bz
                pl.BlockSpec((HID_P, IN_P), lambda i: (0, 0)),         # wo
                pl.BlockSpec((1, IN_P), lambda i: (0, 0)),             # bo
            ],
            out_specs=(
                pl.BlockSpec((tile_b, IN_P), lambda i: (i, 0)),
                pl.BlockSpec((tile_b, Z_P), lambda i: (i, 0)),
                pl.BlockSpec((tile_b, Z_P), lambda i: (i, 0)),
            ),
        ),
        compiler_params=pltpu.CompilerParams(
            dimension_semantics=("parallel",),   # batch tiles split across TCs on v7x
        ),
        cost_estimate=cost,
    )(xp, epsp, w1p, b1p, wms, bms, wzp, bzp, wop, bop)

    # slice the zero-padded lanes / rows back off
    return (xrec_p[:B, :input_dim], mu_p[:B, :z_dim], std_p[:B, :z_dim])


def init_params(key, input_dim, hid_dim, z_dim):
    """Deterministic synthetic init. Weights stored transposed: (in, out). Biases: (1, out)."""
    def linear(k, fan_in, fan_out):
        kw, kb = jax.random.split(k)
        bound = 1.0 / jnp.sqrt(fan_in)
        w = jax.random.uniform(kw, (fan_in, fan_out), jnp.float32, -bound, bound)
        b = jax.random.uniform(kb, (1, fan_out), jnp.float32, -bound, bound)
        return w, b

    k1, k2, k3, k4, k5 = jax.random.split(key, 5)
    w1, b1 = linear(k1, input_dim, hid_dim)   # img_to_hid
    wm, bm = linear(k2, hid_dim, z_dim)       # hid_to_mean
    ws, bs = linear(k3, hid_dim, z_dim)       # hid_to_std
    wz, bz = linear(k4, z_dim, hid_dim)       # z_to_hid
    wo, bo = linear(k5, hid_dim, input_dim)   # hid_to_img
    return dict(w1=w1, b1=b1, wm=wm, bm=bm, ws=ws, bs=bs,
                wz=wz, bz=bz, wo=wo, bo=bo)


def vae_ref(x, eps, p):
    """Pure-JAX reference mirroring the PyTorch forward."""
    h = jax.nn.relu(x @ p["w1"] + p["b1"])
    mu = h @ p["wm"] + p["bm"]
    std = h @ p["ws"] + p["bs"]
    z = mu + eps * std
    h2 = jax.nn.relu(z @ p["wz"] + p["bz"])
    xrec = jax.nn.sigmoid(h2 @ p["wo"] + p["bo"])
    return xrec, mu, std


if __name__ == "__main__":
    # Small shapes consistent with the module: flattened image of dim 256, hid=200, z=20.
    B, INPUT_DIM, HID_DIM, Z_DIM = 16, 256, 200, 20
    TILE_B = 8   # grid of 2 batch tiles -> exercises the pipelined, weight-resident grid

    key = jax.random.PRNGKey(0)
    k_params, k_x, k_eps = jax.random.split(key, 3)

    params = init_params(k_params, INPUT_DIM, HID_DIM, Z_DIM)
    x = jax.random.uniform(k_x, (B, INPUT_DIM), jnp.float32)        # "image" input
    # torch.randn_like(std): deterministic stand-in noise supplied as an input.
    # TODO(synk): could be drawn in-kernel via pltpu.prng_seed/stateful_normal if exact
    #             parity with a JAX reference were not required.
    eps = jax.random.normal(k_eps, (B, Z_DIM), jnp.float32)

    xrec, mu, std = jax.block_until_ready(vae_forward(x, eps, params, tile_b=TILE_B))

    # Cross-check against the pure-JAX reference.
    xrec_r, mu_r, std_r = vae_ref(x, eps, params)
    assert xrec.shape == (B, INPUT_DIM) and mu.shape == (B, Z_DIM) and std.shape == (B, Z_DIM)
    assert jnp.allclose(xrec, xrec_r, atol=1e-4, rtol=1e-5), "x_reconstructed mismatch"
    assert jnp.allclose(mu, mu_r, atol=1e-4, rtol=1e-5), "mu mismatch"
    assert jnp.allclose(std, std_r, atol=1e-4, rtol=1e-5), "std mismatch"

    print("KERNEL_OK")
</pallas_src>

<mosaic_0001>
module attributes {stable_mosaic.version = 11 : i64} {
  func.func @vae_kernel(%arg0: i32, %arg1: memref<8x256xf32, #tpu.memory_space<vmem>>, %arg2: memref<8x128xf32, #tpu.memory_space<vmem>>, %arg3: memref<256x256xf32, #tpu.memory_space<vmem>>, %arg4: memref<1x256xf32, #tpu.memory_space<vmem>>, %arg5: memref<256x256xf32, #tpu.memory_space<vmem>>, %arg6: memref<1x256xf32, #tpu.memory_space<vmem>>, %arg7: memref<128x256xf32, #tpu.memory_space<vmem>>, %arg8: memref<1x256xf32, #tpu.memory_space<vmem>>, %arg9: memref<256x256xf32, #tpu.memory_space<vmem>>, %arg10: memref<1x256xf32, #tpu.memory_space<vmem>>, %arg11: memref<8x256xf32, #tpu.memory_space<vmem>>, %arg12: memref<8x128xf32, #tpu.memory_space<vmem>>, %arg13: memref<8x128xf32, #tpu.memory_space<vmem>>) attributes {dimension_semantics = [#tpu.dimension_semantics<parallel>], iteration_bounds = array<i64: 2>, scalar_prefetch = 0 : i64, scratch_operands = 0 : i64, tpu.core_type = #tpu.core_type<tc>, window_params = [{transform_indices = @transform_0, window_bounds = array<i64: 8, 256>}, {transform_indices = @transform_1, window_bounds = array<i64: 8, 128>}, {pipeline_mode = #tpu.pipeline_mode<synchronous>, transform_indices = @transform_2, window_bounds = array<i64: 256, 256>}, {pipeline_mode = #tpu.pipeline_mode<synchronous>, transform_indices = @transform_3, window_bounds = array<i64: 1, 256>}, {pipeline_mode = #tpu.pipeline_mode<synchronous>, transform_indices = @transform_4, window_bounds = array<i64: 256, 256>}, {pipeline_mode = #tpu.pipeline_mode<synchronous>, transform_indices = @transform_5, window_bounds = array<i64: 1, 256>}, {pipeline_mode = #tpu.pipeline_mode<synchronous>, transform_indices = @transform_6, window_bounds = array<i64: 128, 256>}, {pipeline_mode = #tpu.pipeline_mode<synchronous>, transform_indices = @transform_7, window_bounds = array<i64: 1, 256>}, {pipeline_mode = #tpu.pipeline_mode<synchronous>, transform_indices = @transform_8, window_bounds = array<i64: 256, 256>}, {pipeline_mode = #tpu.pipeline_mode<synchronous>, transform_indices = @transform_9, window_bounds = array<i64: 1, 256>}, {transform_indices = @transform_10, window_bounds = array<i64: 8, 256>}, {transform_indices = @transform_11, window_bounds = array<i64: 8, 128>}, {transform_indices = @transform_12, window_bounds = array<i64: 8, 128>}]} {
    %c0 = arith.constant 0 : index
    %c0_0 = arith.constant 0 : index
    %0 = vector.load %arg1[%c0, %c0_0] : memref<8x256xf32, #tpu.memory_space<vmem>>, vector<8x256xf32>
    %c0_1 = arith.constant 0 : index
    %c0_2 = arith.constant 0 : index
    %1 = vector.load %arg2[%c0_1, %c0_2] : memref<8x128xf32, #tpu.memory_space<vmem>>, vector<8x128xf32>
    %c0_3 = arith.constant 0 : index
    %c0_4 = arith.constant 0 : index
    %2 = vector.load %arg3[%c0_3, %c0_4] : memref<256x256xf32, #tpu.memory_space<vmem>>, vector<256x256xf32>
    %cst = arith.constant dense<0.000000e+00> : vector<8x256xf32>
    %3 = tpu.matmul %0, %2, %cst {dimension_numbers = #tpu.dot_dimension_numbers<[1], [0], [0], [1], [0, 0, 1, 1], [], []>} : vector<8x256xf32>, vector<256x256xf32>, vector<8x256xf32> -> vector<8x256xf32>
    %c0_5 = arith.constant 0 : index
    %c0_6 = arith.constant 0 : index
    %4 = vector.load %arg4[%c0_5, %c0_6] : memref<1x256xf32, #tpu.memory_space<vmem>>, vector<1x256xf32>
    %5 = vector.broadcast %4 : vector<1x256xf32> to vector<8x256xf32>
    %6 = arith.addf %3, %5 : vector<8x256xf32>
    %cst_7 = arith.constant 0.000000e+00 : f32
    %7 = vector.broadcast %cst_7 : f32 to vector<8x256xf32>
    %8 = arith.maximumf %6, %7 : vector<8x256xf32>
    %c0_8 = arith.constant 0 : index
    %c0_9 = arith.constant 0 : index
    %9 = vector.load %arg5[%c0_8, %c0_9] : memref<256x256xf32, #tpu.memory_space<vmem>>, vector<256x256xf32>
    %cst_10 = arith.constant dense<0.000000e+00> : vector<8x256xf32>
    %10 = tpu.matmul %8, %9, %cst_10 {dimension_numbers = #tpu.dot_dimension_numbers<[1], [0], [0], [1], [0, 0, 1, 1], [], []>} : vector<8x256xf32>, vector<256x256xf32>, vector<8x256xf32> -> vector<8x256xf32>
    %c0_11 = arith.constant 0 : index
    %c0_12 = arith.constant 0 : index
    %11 = vector.load %arg6[%c0_11, %c0_12] : memref<1x256xf32, #tpu.memory_space<vmem>>, vector<1x256xf32>
    %12 = vector.broadcast %11 : vector<1x256xf32> to vector<8x256xf32>
    %13 = arith.addf %10, %12 : vector<8x256xf32>
    %14 = vector.extract_strided_slice %13 {offsets = [0, 0], sizes = [8, 128], strides = [1, 1]} : vector<8x256xf32> to vector<8x128xf32>
    %15 = vector.extract_strided_slice %13 {offsets = [0, 128], sizes = [8, 128], strides = [1, 1]} : vector<8x256xf32> to vector<8x128xf32>
    %16 = arith.mulf %1, %15 : vector<8x128xf32>
    %17 = arith.addf %14, %16 : vector<8x128xf32>
    %c0_13 = arith.constant 0 : index
    %c0_14 = arith.constant 0 : index
    %18 = vector.load %arg7[%c0_13, %c0_14] : memref<128x256xf32, #tpu.memory_space<vmem>>, vector<128x256xf32>
    %cst_15 = arith.constant dense<0.000000e+00> : vector<8x256xf32>
    %19 = tpu.matmul %17, %18, %cst_15 {dimension_numbers = #tpu.dot_dimension_numbers<[1], [0], [0], [1], [0, 0, 1, 1], [], []>} : vector<8x128xf32>, vector<128x256xf32>, vector<8x256xf32> -> vector<8x256xf32>
    %c0_16 = arith.constant 0 : index
    %c0_17 = arith.constant 0 : index
    %20 = vector.load %arg8[%c0_16, %c0_17] : memref<1x256xf32, #tpu.memory_space<vmem>>, vector<1x256xf32>
    %21 = vector.broadcast %20 : vector<1x256xf32> to vector<8x256xf32>
    %22 = arith.addf %19, %21 : vector<8x256xf32>
    %cst_18 = arith.constant 0.000000e+00 : f32
    %23 = vector.broadcast %cst_18 : f32 to vector<8x256xf32>
    %24 = arith.maximumf %22, %23 : vector<8x256xf32>
    %c0_19 = arith.constant 0 : index
    %c0_20 = arith.constant 0 : index
    %25 = vector.load %arg9[%c0_19, %c0_20] : memref<256x256xf32, #tpu.memory_space<vmem>>, vector<256x256xf32>
    %cst_21 = arith.constant dense<0.000000e+00> : vector<8x256xf32>
    %26 = tpu.matmul %24, %25, %cst_21 {dimension_numbers = #tpu.dot_dimension_numbers<[1], [0], [0], [1], [0, 0, 1, 1], [], []>} : vector<8x256xf32>, vector<256x256xf32>, vector<8x256xf32> -> vector<8x256xf32>
    %c0_22 = arith.constant 0 : index
    %c0_23 = arith.constant 0 : index
    %27 = vector.load %arg10[%c0_22, %c0_23] : memref<1x256xf32, #tpu.memory_space<vmem>>, vector<1x256xf32>
    %28 = vector.broadcast %27 : vector<1x256xf32> to vector<8x256xf32>
    %29 = arith.addf %26, %28 : vector<8x256xf32>
    %30 = arith.negf %29 : vector<8x256xf32>
    %31 = math.exp %30 : vector<8x256xf32>
    %cst_24 = arith.constant 1.000000e+00 : f32
    %32 = vector.broadcast %cst_24 : f32 to vector<8x256xf32>
    %33 = arith.addf %32, %31 : vector<8x256xf32>
    %34 = arith.divf %32, %33 : vector<8x256xf32>
    %c0_25 = arith.constant 0 : index
    %c0_26 = arith.constant 0 : index
    %35 = vector.load %arg11[%c0_25, %c0_26] : memref<8x256xf32, #tpu.memory_space<vmem>>, vector<8x256xf32>
    tpu.vector_store %arg11[%c0_25, %c0_26], %34 {strides = array<i32>} : memref<8x256xf32, #tpu.memory_space<vmem>>, vector<8x256xf32>,
    %c0_27 = arith.constant 0 : index
    %c0_28 = arith.constant 0 : index
    %36 = vector.load %arg12[%c0_27, %c0_28] : memref<8x128xf32, #tpu.memory_space<vmem>>, vector<8x128xf32>
    tpu.vector_store %arg12[%c0_27, %c0_28], %14 {strides = array<i32>} : memref<8x128xf32, #tpu.memory_space<vmem>>, vector<8x128xf32>,
    %c0_29 = arith.constant 0 : index
    %c0_30 = arith.constant 0 : index
    %37 = vector.load %arg13[%c0_29, %c0_30] : memref<8x128xf32, #tpu.memory_space<vmem>>, vector<8x128xf32>
    tpu.vector_store %arg13[%c0_29, %c0_30], %15 {strides = array<i32>} : memref<8x128xf32, #tpu.memory_space<vmem>>, vector<8x128xf32>,
    return
  }
  func.func @transform_0(%arg0: i32) -> (i32, i32) {
    %c0_i32 = arith.constant 0 : i32
    %c0_i32_0 = arith.constant 0 : i32
    return %arg0, %c0_i32 : i32, i32
  }
  func.func @transform_1(%arg0: i32) -> (i32, i32) {
    %c0_i32 = arith.constant 0 : i32
    %c0_i32_0 = arith.constant 0 : i32
    return %arg0, %c0_i32 : i32, i32
  }
  func.func @transform_2(%arg0: i32) -> (i32, i32) {
    %c0_i32 = arith.constant 0 : i32
    %c0_i32_0 = arith.constant 0 : i32
    %c0_i32_1 = arith.constant 0 : i32
    return %c0_i32, %c0_i32_0 : i32, i32
  }
  func.func @transform_3(%arg0: i32) -> (i32, i32) {
    %c0_i32 = arith.constant 0 : i32
    %c0_i32_0 = arith.constant 0 : i32
    %c0_i32_1 = arith.constant 0 : i32
    return %c0_i32, %c0_i32_0 : i32, i32
  }
  func.func @transform_4(%arg0: i32) -> (i32, i32) {
    %c0_i32 = arith.constant 0 : i32
    %c0_i32_0 = arith.constant 0 : i32
    %c0_i32_1 = arith.constant 0 : i32
    return %c0_i32, %c0_i32_0 : i32, i32
  }
  func.func @transform_5(%arg0: i32) -> (i32, i32) {
    %c0_i32 = arith.constant 0 : i32
    %c0_i32_0 = arith.constant 0 : i32
    %c0_i32_1 = arith.constant 0 : i32
    return %c0_i32, %c0_i32_0 : i32, i32
  }
  func.func @transform_6(%arg0: i32) -> (i32, i32) {
    %c0_i32 = arith.constant 0 : i32
    %c0_i32_0 = arith.constant 0 : i32
    %c0_i32_1 = arith.constant 0 : i32
    return %c0_i32, %c0_i32_0 : i32, i32
  }
  func.func @transform_7(%arg0: i32) -> (i32, i32) {
    %c0_i32 = arith.constant 0 : i32
    %c0_i32_0 = arith.constant 0 : i32
    %c0_i32_1 = arith.constant 0 : i32
    return %c0_i32, %c0_i32_0 : i32, i32
  }
  func.func @transform_8(%arg0: i32) -> (i32, i32) {
    %c0_i32 = arith.constant 0 : i32
    %c0_i32_0 = arith.constant 0 : i32
    %c0_i32_1 = arith.constant 0 : i32
    return %c0_i32, %c0_i32_0 : i32, i32
  }
  func.func @transform_9(%arg0: i32) -> (i32, i32) {
    %c0_i32 = arith.constant 0 : i32
    %c0_i32_0 = arith.constant 0 : i32
    %c0_i32_1 = arith.constant 0 : i32
    return %c0_i32, %c0_i32_0 : i32, i32
  }
  func.func @transform_10(%arg0: i32) -> (i32, i32) {
    %c0_i32 = arith.constant 0 : i32
    %c0_i32_0 = arith.constant 0 : i32
    return %arg0, %c0_i32 : i32, i32
  }
  func.func @transform_11(%arg0: i32) -> (i32, i32) {
    %c0_i32 = arith.constant 0 : i32
    %c0_i32_0 = arith.constant 0 : i32
    return %arg0, %c0_i32 : i32, i32
  }
  func.func @transform_12(%arg0: i32) -> (i32, i32) {
    %c0_i32 = arith.constant 0 : i32
    %c0_i32_0 = arith.constant 0 : i32
    return %arg0, %c0_i32 : i32, i32
  }
}

</mosaic_0001>

<llo_original>
// kernel: vae_forward.1
$region0: #{vae_forward.1}
  #allocation0 [shape = 'u32[]', space=smem, size = 0x4, offset = 0x4, fixed_abs, tag = 'smem constant byte address 0x4 - core index']
  #allocation1 [shape = 'u32[72,128]{1,0:T(1,128)}', space=vmem, size = 0x9000, scoped, tag = 'internal scratch']
  %s0 = inlined_call_operand.vmem [shape: f32[16,256], index: 0, kind: input, shape index: {}]
  %s1 = inlined_call_operand.vmem [shape: f32[16,128], index: 1, kind: input, shape index: {}]
  %s2 = inlined_call_operand.vmem [shape: f32[256,256], index: 2, kind: input, shape index: {}]
  %s3 = inlined_call_operand.vmem [shape: f32[1,256], index: 3, kind: input, shape index: {}]
  %s4 = inlined_call_operand.vmem [shape: f32[256,256], index: 4, kind: input, shape index: {}]
  %s5 = inlined_call_operand.vmem [shape: f32[1,256], index: 5, kind: input, shape index: {}]
  %s6 = inlined_call_operand.vmem [shape: f32[128,256], index: 6, kind: input, shape index: {}]
  %s7 = inlined_call_operand.vmem [shape: f32[1,256], index: 7, kind: input, shape index: {}]
  %s8 = inlined_call_operand.vmem [shape: f32[256,256], index: 8, kind: input, shape index: {}]
  %s9 = inlined_call_operand.vmem [shape: f32[1,256], index: 9, kind: input, shape index: {}]
  %s10 = inlined_call_operand.hbm [shape: f32[16,256], index: 10, kind: output, shape index: {0}]
  %s11 = inlined_call_operand.hbm [shape: f32[16,128], index: 11, kind: output, shape index: {1}]
  %s12 = inlined_call_operand.hbm [shape: f32[16,128], index: 12, kind: output, shape index: {2}]
  %13 = xla_tuple %s10, %s11, %s12
  %s14 = sld [smem:[#allocation0]]
  $region89: #{vae_forward.1} parent=0
    _
  %s16 = ssub.s32 1, %s14
  %s17 = scalar_select 0, %s16, %s14
  $region1: #{vae_forward.1} parent=0
    #allocation2 [shape = 'u8[16384]{0}', space=vmem, size = 0x4000, scoped, tag = 'output window, operand 0']
    #allocation3 [shape = 's32[2]{0}', space=sflag, size = 0x8, scoped, tag = 'scoped memory for vae_forward.1']
    #allocation4 [shape = 'u8[8192]{0}', space=vmem, size = 0x2000, scoped, tag = 'output window, operand 1']
    #allocation5 [shape = 's32[2]{0}', space=sflag, size = 0x8, scoped, tag = 'scoped memory for vae_forward.1']
    #allocation6 [shape = 'u8[8192]{0}', space=vmem, size = 0x2000, scoped, tag = 'output window, operand 2']
    %18 = vsyncpa [#allocation3], 0
    %s19 = scalar_lea.sflag [#allocation3], 1
    %20 = vsyncpa %s19, 0
    %21 = vsyncpa [#allocation5], 0
    %s22 = scalar_lea.sflag [#allocation5], 1
    %23 = vsyncpa %s22, 0
    loop: start=0, step=1, limit=4
    $region2: #{vae_forward.1} parent=1 // loop_pre_header
      _
    $region3: #{vae_forward.1} parent=1 // loop_header
      %s25 = sphi 0, %s29
      %p26 = scmp.ge.s32.totalorder %s25, 4
      %s35 = sphi 0, %s37
      %s38 = sphi 0, %s35
      %s39 = sphi 0, %s38
      %s55 = sphi 0, %s39
      %s61 = sphi 0, %s63
      %s64 = sphi 0, %s61
      %s65 = sphi 0, %s64
      %s81 = sphi 0, %s65
      %s85 = sphi 0, %s85
      %s87 = sphi 0, %s85
      %s88 = sphi 0, %s87
      %s102 = sphi 0, %s88
      %s106 = sphi 0, %s106
      %s108 = sphi 0, %s106
      %s109 = sphi 0, %s108
      %s123 = sphi 0, %s109
      %s127 = sphi 0, %s127
      %s129 = sphi 0, %s127
      %s130 = sphi 0, %s129
      %s144 = sphi 0, %s130
      %s148 = sphi 0, %s148
      %s150 = sphi 0, %s148
      %s151 = sphi 0, %s150
      %s165 = sphi 0, %s151
      %s169 = sphi 0, %s169
      %s171 = sphi 0, %s169
      %s172 = sphi 0, %s171
      %s186 = sphi 0, %s172
      %s190 = sphi 0, %s190
      %s192 = sphi 0, %s190
      %s193 = sphi 0, %s192
      %s207 = sphi 0, %s193
      %s211 = sphi 0, %s211
      %s213 = sphi 0, %s211
      %s214 = sphi 0, %s213
      %s228 = sphi 0, %s214
      %s232 = sphi 0, %s232
      %s234 = sphi 0, %s232
      %s235 = sphi 0, %s234
      %s249 = sphi 0, %s235
      %s255 = sphi 0, %s257
      %s258 = sphi 0, %s255
      %s259 = sphi 0, %s258
      %s275 = sphi 0, %s259
      %s281 = sphi 0, %s283
      %s284 = sphi 0, %s281
      %s285 = sphi 0, %s284
      %s301 = sphi 0, %s285
      %s307 = sphi 0, %s309
      %s310 = sphi 0, %s307
      %s311 = sphi 0, %s310
      %s327 = sphi 0, %s311
    $region4: #{vae_forward.1} parent=1 // loop_header_branch
      %28 = sbr.rel (%p26) target = $region8
    $region5: #{vae_forward.1} parent=1 // loop_body
      %s30 = ssub.s32 %s25, 1
      %s31 = ssub.s32 %s25, 2
      %s32 = sadd.s32 %s25, 1
      %s33 = ssub.s32 %s25, %s32
      %p34 = scmp.eq.s32.totalorder %s33, 0
      %s36 = sadd.s32 %s35, 1
      %s37 = scalar_select %p34, %s35, %s36
      %p40 = pneg %p34
      %p41 = scmp.eq.s32.totalorder %s25, 1
      %p42 = por %p40, %p41
      %p43 = scmp.ne.s32.totalorder %s35, %s38
      %p44 = scmp.eq.s32.totalorder %s25, 0
      %p45 = por %p43, %p44
      %p46 = scmp.ne.s32.totalorder %s35, %s38
      %p47 = scmp.eq.s32.totalorder %s30, 1
      %p48 = por %p46, %p47
      %p49 = scmp.ne.s32.totalorder %s38, %s39
      %p50 = scmp.eq.s32.totalorder %s30, 0
      %p51 = por %p49, %p50
      %p52 = scmp.ne.s32.totalorder %s38, %s39
      %p53 = scmp.eq.s32.totalorder %s31, 1
      %p54 = por %p52, %p53
      %p56 = scmp.ne.s32.totalorder %s39, %s55
      %p57 = scmp.eq.s32.totalorder %s31, 0
      %p58 = por %p56, %p57
      %s59 = ssub.s32 %s25, %s32
      %p60 = scmp.eq.s32.totalorder %s59, 0
      %s62 = sadd.s32 %s61, 1
      %s63 = scalar_select %p60, %s61, %s62
      %p66 = pneg %p60
      %p67 = scmp.eq.s32.totalorder %s25, 1
      %p68 = por %p66, %p67
      %p69 = scmp.ne.s32.totalorder %s61, %s64
      %p70 = scmp.eq.s32.totalorder %s25, 0
      %p71 = por %p69, %p70
      %p72 = scmp.ne.s32.totalorder %s61, %s64
      %p73 = scmp.eq.s32.totalorder %s30, 1
      %p74 = por %p72, %p73
      %p75 = scmp.ne.s32.totalorder %s64, %s65
      %p76 = scmp.eq.s32.totalorder %s30, 0
      %p77 = por %p75, %p76
      %p78 = scmp.ne.s32.totalorder %s64, %s65
      %p79 = scmp.eq.s32.totalorder %s31, 1
      %p80 = por %p78, %p79
      %p82 = scmp.ne.s32.totalorder %s65, %s81
      %p83 = scmp.eq.s32.totalorder %s31, 0
      %p84 = por %p82, %p83
      %s86 = sadd.s32 %s85, 1
      %p89 = scmp.eq.s32.totalorder %s25, 1
      %p90 = scmp.ne.s32.totalorder %s85, %s87
      %p91 = scmp.eq.s32.totalorder %s25, 0
      %p92 = por %p90, %p91
      %p93 = scmp.ne.s32.totalorder %s85, %s87
      %p94 = scmp.eq.s32.totalorder %s30, 1
      %p95 = por %p93, %p94
      %p96 = scmp.ne.s32.totalorder %s87, %s88
      %p97 = scmp.eq.s32.totalorder %s30, 0
      %p98 = por %p96, %p97
      %p99 = scmp.ne.s32.totalorder %s87, %s88
      %p100 = scmp.eq.s32.totalorder %s31, 1
      %p101 = por %p99, %p100
      %p103 = scmp.ne.s32.totalorder %s88, %s102
      %p104 = scmp.eq.s32.totalorder %s31, 0
      %p105 = por %p103, %p104
      %s107 = sadd.s32 %s106, 1
      %p110 = scmp.eq.s32.totalorder %s25, 1
      %p111 = scmp.ne.s32.totalorder %s106, %s108
      %p112 = scmp.eq.s32.totalorder %s25, 0
      %p113 = por %p111, %p112
      %p114 = scmp.ne.s32.totalorder %s106, %s108
      %p115 = scmp.eq.s32.totalorder %s30, 1
      %p116 = por %p114, %p115
      %p117 = scmp.ne.s32.totalorder %s108, %s109
      %p118 = scmp.eq.s32.totalorder %s30, 0
      %p119 = por %p117, %p118
      %p120 = scmp.ne.s32.totalorder %s108, %s109
      %p121 = scmp.eq.s32.totalorder %s31, 1
      %p122 = por %p120, %p121
      %p124 = scmp.ne.s32.totalorder %s109, %s123
      %p125 = scmp.eq.s32.totalorder %s31, 0
      %p126 = por %p124, %p125
      %s128 = sadd.s32 %s127, 1
      %p131 = scmp.eq.s32.totalorder %s25, 1
      %p132 = scmp.ne.s32.totalorder %s127, %s129
      %p133 = scmp.eq.s32.totalorder %s25, 0
      %p134 = por %p132, %p133
      %p135 = scmp.ne.s32.totalorder %s127, %s129
      %p136 = scmp.eq.s32.totalorder %s30, 1
      %p137 = por %p135, %p136
      %p138 = scmp.ne.s32.totalorder %s129, %s130
      %p139 = scmp.eq.s32.totalorder %s30, 0
      %p140 = por %p138, %p139
      %p141 = scmp.ne.s32.totalorder %s129, %s130
      %p142 = scmp.eq.s32.totalorder %s31, 1
      %p143 = por %p141, %p142
      %p145 = scmp.ne.s32.totalorder %s130, %s144
      %p146 = scmp.eq.s32.totalorder %s31, 0
      %p147 = por %p145, %p146
      %s149 = sadd.s32 %s148, 1
      %p152 = scmp.eq.s32.totalorder %s25, 1
      %p153 = scmp.ne.s32.totalorder %s148, %s150
      %p154 = scmp.eq.s32.totalorder %s25, 0
      %p155 = por %p153, %p154
      %p156 = scmp.ne.s32.totalorder %s148, %s150
      %p157 = scmp.eq.s32.totalorder %s30, 1
      %p158 = por %p156, %p157
      %p159 = scmp.ne.s32.totalorder %s150, %s151
      %p160 = scmp.eq.s32.totalorder %s30, 0
      %p161 = por %p159, %p160
      %p162 = scmp.ne.s32.totalorder %s150, %s151
      %p163 = scmp.eq.s32.totalorder %s31, 1
      %p164 = por %p162, %p163
      %p166 = scmp.ne.s32.totalorder %s151, %s165
      %p167 = scmp.eq.s32.totalorder %s31, 0
      %p168 = por %p166, %p167
      %s170 = sadd.s32 %s169, 1
      %p173 = scmp.eq.s32.totalorder %s25, 1
      %p174 = scmp.ne.s32.totalorder %s169, %s171
      %p175 = scmp.eq.s32.totalorder %s25, 0
      %p176 = por %p174, %p175
      %p177 = scmp.ne.s32.totalorder %s169, %s171
      %p178 = scmp.eq.s32.totalorder %s30, 1
      %p179 = por %p177, %p178
      %p180 = scmp.ne.s32.totalorder %s171, %s172
      %p181 = scmp.eq.s32.totalorder %s30, 0
      %p182 = por %p180, %p181
      %p183 = scmp.ne.s32.totalorder %s171, %s172
      %p184 = scmp.eq.s32.totalorder %s31, 1
      %p185 = por %p183, %p184
      %p187 = scmp.ne.s32.totalorder %s172, %s186
      %p188 = scmp.eq.s32.totalorder %s31, 0
      %p189 = por %p187, %p188
      %s191 = sadd.s32 %s190, 1
      %p194 = scmp.eq.s32.totalorder %s25, 1
      %p195 = scmp.ne.s32.totalorder %s190, %s192
      %p196 = scmp.eq.s32.totalorder %s25, 0
      %p197 = por %p195, %p196
      %p198 = scmp.ne.s32.totalorder %s190, %s192
      %p199 = scmp.eq.s32.totalorder %s30, 1
      %p200 = por %p198, %p199
      %p201 = scmp.ne.s32.totalorder %s192, %s193
      %p202 = scmp.eq.s32.totalorder %s30, 0
      %p203 = por %p201, %p202
      %p204 = scmp.ne.s32.totalorder %s192, %s193
      %p205 = scmp.eq.s32.totalorder %s31, 1
      %p206 = por %p204, %p205
      %p208 = scmp.ne.s32.totalorder %s193, %s207
      %p209 = scmp.eq.s32.totalorder %s31, 0
      %p210 = por %p208, %p209
      %s212 = sadd.s32 %s211, 1
      %p215 = scmp.eq.s32.totalorder %s25, 1
      %p216 = scmp.ne.s32.totalorder %s211, %s213
      %p217 = scmp.eq.s32.totalorder %s25, 0
      %p218 = por %p216, %p217
      %p219 = scmp.ne.s32.totalorder %s211, %s213
      %p220 = scmp.eq.s32.totalorder %s30, 1
      %p221 = por %p219, %p220
      %p222 = scmp.ne.s32.totalorder %s213, %s214
      %p223 = scmp.eq.s32.totalorder %s30, 0
      %p224 = por %p222, %p223
      %p225 = scmp.ne.s32.totalorder %s213, %s214
      %p226 = scmp.eq.s32.totalorder %s31, 1
      %p227 = por %p225, %p226
      %p229 = scmp.ne.s32.totalorder %s214, %s228
      %p230 = scmp.eq.s32.totalorder %s31, 0
      %p231 = por %p229, %p230
      %s233 = sadd.s32 %s232, 1
      %p236 = scmp.eq.s32.totalorder %s25, 1
      %p237 = scmp.ne.s32.totalorder %s232, %s234
      %p238 = scmp.eq.s32.totalorder %s25, 0
      %p239 = por %p237, %p238
      %p240 = scmp.ne.s32.totalorder %s232, %s234
      %p241 = scmp.eq.s32.totalorder %s30, 1
      %p242 = por %p240, %p241
      %p243 = scmp.ne.s32.totalorder %s234, %s235
      %p244 = scmp.eq.s32.totalorder %s30, 0
      %p245 = por %p243, %p244
      %p246 = scmp.ne.s32.totalorder %s234, %s235
      %p247 = scmp.eq.s32.totalorder %s31, 1
      %p248 = por %p246, %p247
      %p250 = scmp.ne.s32.totalorder %s235, %s249
      %p251 = scmp.eq.s32.totalorder %s31, 0
      %p252 = por %p250, %p251
      %s253 = ssub.s32 %s25, %s32
      %p254 = scmp.eq.s32.totalorder %s253, 0
      %s256 = sadd.s32 %s255, 1
      %s257 = scalar_select %p254, %s255, %s256
      %p260 = pneg %p254
      %p261 = scmp.eq.s32.totalorder %s25, 1
      %p262 = por %p260, %p261
      %p263 = scmp.ne.s32.totalorder %s255, %s258
      %p264 = scmp.eq.s32.totalorder %s25, 0
      %p265 = por %p263, %p264
      %p266 = scmp.ne.s32.totalorder %s255, %s258
      %p267 = scmp.eq.s32.totalorder %s30, 1
      %p268 = por %p266, %p267
      %p269 = scmp.ne.s32.totalorder %s258, %s259
      %p270 = scmp.eq.s32.totalorder %s30, 0
      %p271 = por %p269, %p270
      %p272 = scmp.ne.s32.totalorder %s258, %s259
      %p273 = scmp.eq.s32.totalorder %s31, 1
      %p274 = por %p272, %p273
      %p276 = scmp.ne.s32.totalorder %s259, %s275
      %p277 = scmp.eq.s32.totalorder %s31, 0
      %p278 = por %p276, %p277
      %s279 = ssub.s32 %s25, %s32
      %p280 = scmp.eq.s32.totalorder %s279, 0
      %s282 = sadd.s32 %s281, 1
      %s283 = scalar_select %p280, %s281, %s282
      %p286 = pneg %p280
      %p287 = scmp.eq.s32.totalorder %s25, 1
      %p288 = por %p286, %p287
      %p289 = scmp.ne.s32.totalorder %s281, %s284
      %p290 = scmp.eq.s32.totalorder %s25, 0
      %p291 = por %p289, %p290
      %p292 = scmp.ne.s32.totalorder %s281, %s284
      %p293 = scmp.eq.s32.totalorder %s30, 1
      %p294 = por %p292, %p293
      %p295 = scmp.ne.s32.totalorder %s284, %s285
      %p296 = scmp.eq.s32.totalorder %s30, 0
      %p297 = por %p295, %p296
      %p298 = scmp.ne.s32.totalorder %s284, %s285
      %p299 = scmp.eq.s32.totalorder %s31, 1
      %p300 = por %p298, %p299
      %p302 = scmp.ne.s32.totalorder %s285, %s301
      %p303 = scmp.eq.s32.totalorder %s31, 0
      %p304 = por %p302, %p303
      %s305 = ssub.s32 %s25, %s32
      %p306 = scmp.eq.s32.totalorder %s305, 0
      %s308 = sadd.s32 %s307, 1
      %s309 = scalar_select %p306, %s307, %s308
      %p312 = pneg %p306
      %p313 = scmp.eq.s32.totalorder %s25, 1
      %p314 = por %p312, %p313
      %p315 = scmp.ne.s32.totalorder %s307, %s310
      %p316 = scmp.eq.s32.totalorder %s25, 0
      %p317 = por %p315, %p316
      %p318 = scmp.ne.s32.totalorder %s307, %s310
      %p319 = scmp.eq.s32.totalorder %s30, 1
      %p320 = por %p318, %p319
      %p321 = scmp.ne.s32.totalorder %s310, %s311
      %p322 = scmp.eq.s32.totalorder %s30, 0
      %p323 = por %p321, %p322
      %p324 = scmp.ne.s32.totalorder %s310, %s311
      %p325 = scmp.eq.s32.totalorder %s31, 1
      %p326 = por %p324, %p325
      %p328 = scmp.ne.s32.totalorder %s311, %s327
      %p329 = scmp.eq.s32.totalorder %s31, 0
      %p330 = por %p328, %p329
      %p331 = scmp.le.s32.totalorder 1, %s25
      %p332 = scmp.lt.s32.totalorder %s25, 3
      %p333 = pnand %p331, %p332
      %p334 = pneg %p333
      // Predicated region
      $region9: #{vae_forward.1} parent=5 // pred_check
        _
      $region10: #{vae_forward.1} parent=5 // pred_check_branch
        %336 = sbr.rel (%p333) target = $region12
      $region11: #{vae_forward.1} parent=5 // pred_region
        %s337 = ssub.s32 %s25, 1
        // Predicated region
        $region13: #{vae_forward.1} parent=11 // pred_check
          %p338 = pneg %p98
        $region14: #{vae_forward.1} parent=11 // pred_check_branch
          %340 = sbr.rel (%p338) target = $region16
        $region15: #{vae_forward.1} parent=11 // pred_region
          _
        $region16: #{vae_forward.1} parent=11 // pred_fallthru
          _
        // Predicated region
        $region17: #{vae_forward.1} parent=11 // pred_check
          %p341 = pneg %p119
        $region18: #{vae_forward.1} parent=11 // pred_check_branch
          %343 = sbr.rel (%p341) target = $region20
        $region19: #{vae_forward.1} parent=11 // pred_region
          _
        $region20: #{vae_forward.1} parent=11 // pred_fallthru
          _
        // Predicated region
        $region21: #{vae_forward.1} parent=11 // pred_check
          %p344 = pneg %p140
        $region22: #{vae_forward.1} parent=11 // pred_check_branch
          %346 = sbr.rel (%p344) target = $region24
        $region23: #{vae_forward.1} parent=11 // pred_region
          _
        $region24: #{vae_forward.1} parent=11 // pred_fallthru
          _
        // Predicated region
        $region25: #{vae_forward.1} parent=11 // pred_check
          %p347 = pneg %p161
        $region26: #{vae_forward.1} parent=11 // pred_check_branch
          %349 = sbr.rel (%p347) target = $region28
        $region27: #{vae_forward.1} parent=11 // pred_region
          _
        $region28: #{vae_forward.1} parent=11 // pred_fallthru
          _
        // Predicated region
        $region29: #{vae_forward.1} parent=11 // pred_check
          %p350 = pneg %p182
        $region30: #{vae_forward.1} parent=11 // pred_check_branch
          %352 = sbr.rel (%p350) target = $region32
        $region31: #{vae_forward.1} parent=11 // pred_region
          _
        $region32: #{vae_forward.1} parent=11 // pred_fallthru
          _
        // Predicated region
        $region33: #{vae_forward.1} parent=11 // pred_check
          %p353 = pneg %p203
        $region34: #{vae_forward.1} parent=11 // pred_check_branch
          %355 = sbr.rel (%p353) target = $region36
        $region35: #{vae_forward.1} parent=11 // pred_region
          _
        $region36: #{vae_forward.1} parent=11 // pred_fallthru
          _
        // Predicated region
        $region37: #{vae_forward.1} parent=11 // pred_check
          %p356 = pneg %p224
        $region38: #{vae_forward.1} parent=11 // pred_check_branch
          %358 = sbr.rel (%p356) target = $region40
        $region39: #{vae_forward.1} parent=11 // pred_region
          _
        $region40: #{vae_forward.1} parent=11 // pred_fallthru
          _
        // Predicated region
        $region41: #{vae_forward.1} parent=11 // pred_check
          %p359 = pneg %p245
        $region42: #{vae_forward.1} parent=11 // pred_check_branch
          %361 = sbr.rel (%p359) target = $region44
        $region43: #{vae_forward.1} parent=11 // pred_region
          _
        $region44: #{vae_forward.1} parent=11 // pred_fallthru
          _
      $region12: #{vae_forward.1} parent=5 // pred_fallthru
        _
      %p362 = scmp.lt.s32.totalorder %s25, 2
      // Predicated region
      $region45: #{vae_forward.1} parent=5 // pred_check
        %p363 = pneg %p362
      $region46: #{vae_forward.1} parent=5 // pred_check_branch
        %365 = sbr.rel (%p363) target = $region48
      $region47: #{vae_forward.1} parent=5 // pred_region
        // Predicated region
        $region49: #{vae_forward.1} parent=47 // pred_check
          %p366 = pneg %p45
        $region50: #{vae_forward.1} parent=47 // pred_check_branch
          %368 = sbr.rel (%p366) target = $region52
        $region51: #{vae_forward.1} parent=47 // pred_region
          %p369 = scmp.lt.s32.totalorder %s25, 1
          %s370 = scalar_select %p369, %s25, 1
          %s371 = smul.addr %s370, 2
          %s372 = smul.addr %s371, 8
          %s373 = scalar_lea.vmem %s0, %s372
        $region52: #{vae_forward.1} parent=47 // pred_fallthru
          _
        // Predicated region
        $region53: #{vae_forward.1} parent=47 // pred_check
          %p374 = pneg %p71
        $region54: #{vae_forward.1} parent=47 // pred_check_branch
          %376 = sbr.rel (%p374) target = $region56
        $region55: #{vae_forward.1} parent=47 // pred_region
          %p377 = scmp.lt.s32.totalorder %s25, 1
          %s378 = scalar_select %p377, %s25, 1
          %s379 = smul.addr %s378, 8
          %s380 = scalar_lea.vmem %s1, %s379
        $region56: #{vae_forward.1} parent=47 // pred_fallthru
          _
      $region48: #{vae_forward.1} parent=5 // pred_fallthru
        _
      %p381 = scmp.le.s32.totalorder 1, %s25
      %p382 = scmp.lt.s32.totalorder %s25, 3
      %p383 = pnand %p381, %p382
      %p384 = pneg %p383
      // Predicated region
      $region57: #{vae_forward.1} parent=5 // pred_check
        _
      $region58: #{vae_forward.1} parent=5 // pred_check_branch
        %386 = sbr.rel (%p383) target = $region60
      $region59: #{vae_forward.1} parent=5 // pred_region
        %s387 = ssub.s32 %s25, 1
        %p388 = scmp.lt.s32.totalorder %s30, 1
        %s389 = scalar_select %p388, %s30, 1
        %s390 = smul.addr %s389, 2
        %s391 = smul.addr %s390, 8
        %s392 = scalar_lea.vmem %s0, %s391
        %p393 = pneg %p51
        %p394 = pneg %p48
        %p395 = scmp.lt.s32.totalorder %s30, 1
        %s396 = scalar_select %p395, %s30, 1
        %s397 = smul.addr %s396, 8
        %s398 = scalar_lea.vmem %s1, %s397
        %p399 = pneg %p77
        %p400 = pneg %p74
        %p401 = pneg %p98
        %p402 = pneg %p95
        %p403 = pneg %p119
        %p404 = pneg %p116
        %p405 = pneg %p140
        %p406 = pneg %p137
        %p407 = pneg %p161
        %p408 = pneg %p158
        %p409 = pneg %p182
        %p410 = pneg %p179
        %p411 = pneg %p203
        %p412 = pneg %p200
        %p413 = pneg %p224
        %p414 = pneg %p221
        %p415 = pneg %p245
        %p416 = pneg %p242
        %p417 = pneg %p271
        %p418 = pneg %p268
        %s419 = sand.u32 %s258, 1
        %s420 = scalar_lea.sflag [#allocation3], %s419
        %s421 = sand.u32 %s258, 1
        %s422 = smul.addr %s421, 16
        %s423 = scalar_lea.vmem [#allocation2], %s422
        %p424 = pneg %p297
        %p425 = pneg %p294
        %s426 = sand.u32 %s30, 1
        %s427 = scalar_lea.sflag [#allocation5], %s426
        %s428 = sand.u32 %s284, 1
        %s429 = smul.addr %s428, 8
        %s430 = scalar_lea.vmem [#allocation4], %s429
        %p431 = pneg %p323
        %p432 = pneg %p320
        %s433 = sand.u32 %s30, 1
        %s434 = scalar_lea.sflag [#allocation5], %s433
        %s435 = sand.u32 %s310, 1
        %s436 = smul.addr %s435, 8
        %s437 = scalar_lea.vmem [#allocation6], %s436
        %p438 = scmp.lt.s32.totalorder %s30, 1
        %s439 = scalar_select %p438, %s30, 1
        %s440 = smul.addr %s439, 2
        %s441 = smul.addr %s440, 8
        %s442 = scalar_lea.vmem %s0, %s441
        %p443 = scmp.lt.s32.totalorder %s30, 1
        %s444 = scalar_select %p443, %s30, 1
        %s445 = smul.addr %s444, 8
        %s446 = scalar_lea.vmem %s1, %s445
        %v447 = vld [vmem:[%s442] sm:$0xff]
        %v448 = vld [vmem:[%s442 + $0x8] sm:$0xff]
        %v449 = vld [vmem:[%s446] sm:$0xff]
        %v450 = vld [vmem:[%s2] sm:$0xff]
        %v451 = vld [vmem:[%s2 + $0x8] sm:$0xff]
        %v452 = vld [vmem:[%s2 + $0x10] sm:$0xff]
        %v453 = vld [vmem:[%s2 + $0x18] sm:$0xff]
        %v454 = vld [vmem:[%s2 + $0x20] sm:$0xff]
        %v455 = vld [vmem:[%s2 + $0x28] sm:$0xff]
        %v456 = vld [vmem:[%s2 + $0x30] sm:$0xff]
        %v457 = vld [vmem:[%s2 + $0x38] sm:$0xff]
        %v458 = vld [vmem:[%s2 + $0x40] sm:$0xff]
        %v459 = vld [vmem:[%s2 + $0x48] sm:$0xff]
        %v460 = vld [vmem:[%s2 + $0x50] sm:$0xff]
        %v461 = vld [vmem:[%s2 + $0x58] sm:$0xff]
        %v462 = vld [vmem:[%s2 + $0x60] sm:$0xff]
        %v463 = vld [vmem:[%s2 + $0x68] sm:$0xff]
        %v464 = vld [vmem:[%s2 + $0x70] sm:$0xff]
        %v465 = vld [vmem:[%s2 + $0x78] sm:$0xff]
        %v466 = vld [vmem:[%s2 + $0x80] sm:$0xff]
        %v467 = vld [vmem:[%s2 + $0x88] sm:$0xff]
        %v468 = vld [vmem:[%s2 + $0x90] sm:$0xff]
        %v469 = vld [vmem:[%s2 + $0x98] sm:$0xff]
        %v470 = vld [vmem:[%s2 + $0xa0] sm:$0xff]
        %v471 = vld [vmem:[%s2 + $0xa8] sm:$0xff]
        %v472 = vld [vmem:[%s2 + $0xb0] sm:$0xff]
        %v473 = vld [vmem:[%s2 + $0xb8] sm:$0xff]
        %v474 = vld [vmem:[%s2 + $0xc0] sm:$0xff]
        %v475 = vld [vmem:[%s2 + $0xc8] sm:$0xff]
        %v476 = vld [vmem:[%s2 + $0xd0] sm:$0xff]
        %v477 = vld [vmem:[%s2 + $0xd8] sm:$0xff]
        %v478 = vld [vmem:[%s2 + $0xe0] sm:$0xff]
        %v479 = vld [vmem:[%s2 + $0xe8] sm:$0xff]
        %v480 = vld [vmem:[%s2 + $0xf0] sm:$0xff]
        %v481 = vld [vmem:[%s2 + $0xf8] sm:$0xff]
        %v482 = vld [vmem:[%s2 + $0x100] sm:$0xff]
        %v483 = vld [vmem:[%s2 + $0x108] sm:$0xff]
        %v484 = vld [vmem:[%s2 + $0x110] sm:$0xff]
        %v485 = vld [vmem:[%s2 + $0x118] sm:$0xff]
        %v486 = vld [vmem:[%s2 + $0x120] sm:$0xff]
        %v487 = vld [vmem:[%s2 + $0x128] sm:$0xff]
        %v488 = vld [vmem:[%s2 + $0x130] sm:$0xff]
        %v489 = vld [vmem:[%s2 + $0x138] sm:$0xff]
        %v490 = vld [vmem:[%s2 + $0x140] sm:$0xff]
        %v491 = vld [vmem:[%s2 + $0x148] sm:$0xff]
        %v492 = vld [vmem:[%s2 + $0x150] sm:$0xff]
        %v493 = vld [vmem:[%s2 + $0x158] sm:$0xff]
        %v494 = vld [vmem:[%s2 + $0x160] sm:$0xff]
        %v495 = vld [vmem:[%s2 + $0x168] sm:$0xff]
        %v496 = vld [vmem:[%s2 + $0x170] sm:$0xff]
        %v497 = vld [vmem:[%s2 + $0x178] sm:$0xff]
        %v498 = vld [vmem:[%s2 + $0x180] sm:$0xff]
        %v499 = vld [vmem:[%s2 + $0x188] sm:$0xff]
        %v500 = vld [vmem:[%s2 + $0x190] sm:$0xff]
        %v501 = vld [vmem:[%s2 + $0x198] sm:$0xff]
        %v502 = vld [vmem:[%s2 + $0x1a0] sm:$0xff]
        %v503 = vld [vmem:[%s2 + $0x1a8] sm:$0xff]
        %v504 = vld [vmem:[%s2 + $0x1b0] sm:$0xff]
        %v505 = vld [vmem:[%s2 + $0x1b8] sm:$0xff]
        %v506 = vld [vmem:[%s2 + $0x1c0] sm:$0xff]
        %v507 = vld [vmem:[%s2 + $0x1c8] sm:$0xff]
        %v508 = vld [vmem:[%s2 + $0x1d0] sm:$0xff]
        %v509 = vld [vmem:[%s2 + $0x1d8] sm:$0xff]
        %v510 = vld [vmem:[%s2 + $0x1e0] sm:$0xff]
        %v511 = vld [vmem:[%s2 + $0x1e8] sm:$0xff]
        %v512 = vld [vmem:[%s2 + $0x1f0] sm:$0xff]
        %v513 = vld [vmem:[%s2 + $0x1f8] sm:$0xff]
        %v514 = vld [vmem:[%s3] sm:$0x3]
        %v516 = vperm.slane %v514, 0
        %v517 = vperm.slane %v514, 1
        %520 = vmatpush.msra.mxu0 %v480
        %521 = vmatpush.msra.mxu0 %v478
        %522 = vmatpush.msra.mxu0 %v476
        %523 = vmatpush.msra.mxu0 %v474
        %524 = vmatpush.msra.mxu0 %v472
        %525 = vmatpush.msra.mxu0 %v470
        %526 = vmatpush.msra.mxu0 %v468
        %527 = vmatpush.msra.mxu0 %v466
        %528 = vmatpush.msra.mxu0 %v464
        %529 = vmatpush.msra.mxu0 %v462
        %530 = vmatpush.msra.mxu0 %v460
        %531 = vmatpush.msra.mxu0 %v458
        %532 = vmatpush.msra.mxu0 %v456
        %533 = vmatpush.msra.mxu0 %v454
        %534 = vmatpush.msra.mxu0 %v452
        %535 = vmatpush.msra.mxu0 %v450
        %536 = vmatmul.f32.gmra.mxu0 %v447
        %v537 = vpop.f32.mrf.mxu0
        %v538 = vadd.f32 %v516, %v537
        %539 = vdwg.mxu0
        %540 = vmatpush.msra.mxu0 %v512
        %541 = vmatpush.msra.mxu0 %v510
        %542 = vmatpush.msra.mxu0 %v508
        %543 = vmatpush.msra.mxu0 %v506
        %544 = vmatpush.msra.mxu0 %v504
        %545 = vmatpush.msra.mxu0 %v502
        %546 = vmatpush.msra.mxu0 %v500
        %547 = vmatpush.msra.mxu0 %v498
        %548 = vmatpush.msra.mxu0 %v496
        %549 = vmatpush.msra.mxu0 %v494
        %550 = vmatpush.msra.mxu0 %v492
        %551 = vmatpush.msra.mxu0 %v490
        %552 = vmatpush.msra.mxu0 %v488
        %553 = vmatpush.msra.mxu0 %v486
        %554 = vmatpush.msra.mxu0 %v484
        %555 = vmatpush.msra.mxu0 %v482
        %556 = vmatmul.f32.gmra.mxu0 %v448
        %v557 = vpop.f32.mrf.mxu0
        %v558 = vadd.f32 %v538, %v557
        %559 = vdwg.mxu0
        %560 = vmatpush.msra.mxu0 %v481
        %561 = vmatpush.msra.mxu0 %v479
        %562 = vmatpush.msra.mxu0 %v477
        %563 = vmatpush.msra.mxu0 %v475
        %564 = vmatpush.msra.mxu0 %v473
        %565 = vmatpush.msra.mxu0 %v471
        %566 = vmatpush.msra.mxu0 %v469
        %567 = vmatpush.msra.mxu0 %v467
        %568 = vmatpush.msra.mxu0 %v465
        %569 = vmatpush.msra.mxu0 %v463
        %570 = vmatpush.msra.mxu0 %v461
        %571 = vmatpush.msra.mxu0 %v459
        %572 = vmatpush.msra.mxu0 %v457
        %573 = vmatpush.msra.mxu0 %v455
        %574 = vmatpush.msra.mxu0 %v453
        %575 = vmatpush.msra.mxu0 %v451
        %576 = vmatmul.f32.gmra.mxu0 %v447
        %v577 = vpop.f32.mrf.mxu0
        %v578 = vadd.f32 %v517, %v577
        %579 = vdwg.mxu0
        %580 = vmatpush.msra.mxu0 %v513
        %581 = vmatpush.msra.mxu0 %v511
        %582 = vmatpush.msra.mxu0 %v509
        %583 = vmatpush.msra.mxu0 %v507
        %584 = vmatpush.msra.mxu0 %v505
        %585 = vmatpush.msra.mxu0 %v503
        %586 = vmatpush.msra.mxu0 %v501
        %587 = vmatpush.msra.mxu0 %v499
        %588 = vmatpush.msra.mxu0 %v497
        %589 = vmatpush.msra.mxu0 %v495
        %590 = vmatpush.msra.mxu0 %v493
        %591 = vmatpush.msra.mxu0 %v491
        %592 = vmatpush.msra.mxu0 %v489
        %593 = vmatpush.msra.mxu0 %v487
        %594 = vmatpush.msra.mxu0 %v485
        %595 = vmatpush.msra.mxu0 %v483
        %596 = vmatmul.f32.gmra.mxu0 %v448
        %v597 = vpop.f32.mrf.mxu0
        %v598 = vadd.f32 %v578, %v597
        %599 = vdwg.mxu0
        %v600 = vmax.f32 %v558, 0.0
        %v601 = vmax.f32 %v598, 0.0
        %v602 = vld [vmem:[%s4] sm:$0xff]
        %v603 = vld [vmem:[%s4 + $0x8] sm:$0xff]
        %v604 = vld [vmem:[%s4 + $0x10] sm:$0xff]
        %v605 = vld [vmem:[%s4 + $0x18] sm:$0xff]
        %v606 = vld [vmem:[%s4 + $0x20] sm:$0xff]
        %v607 = vld [vmem:[%s4 + $0x28] sm:$0xff]
        %v608 = vld [vmem:[%s4 + $0x30] sm:$0xff]
        %v609 = vld [vmem:[%s4 + $0x38] sm:$0xff]
        %v610 = vld [vmem:[%s4 + $0x40] sm:$0xff]
        %v611 = vld [vmem:[%s4 + $0x48] sm:$0xff]
        %v612 = vld [vmem:[%s4 + $0x50] sm:$0xff]
        %v613 = vld [vmem:[%s4 + $0x58] sm:$0xff]
        %v614 = vld [vmem:[%s4 + $0x60] sm:$0xff]
        %v615 = vld [vmem:[%s4 + $0x68] sm:$0xff]
        %v616 = vld [vmem:[%s4 + $0x70] sm:$0xff]
        %v617 = vld [vmem:[%s4 + $0x78] sm:$0xff]
        %v618 = vld [vmem:[%s4 + $0x80] sm:$0xff]
        %v619 = vld [vmem:[%s4 + $0x88] sm:$0xff]
        %v620 = vld [vmem:[%s4 + $0x90] sm:$0xff]
        %v621 = vld [vmem:[%s4 + $0x98] sm:$0xff]
        %v622 = vld [vmem:[%s4 + $0xa0] sm:$0xff]
        %v623 = vld [vmem:[%s4 + $0xa8] sm:$0xff]
        %v624 = vld [vmem:[%s4 + $0xb0] sm:$0xff]
        %v625 = vld [vmem:[%s4 + $0xb8] sm:$0xff]
        %v626 = vld [vmem:[%s4 + $0xc0] sm:$0xff]
        %v627 = vld [vmem:[%s4 + $0xc8] sm:$0xff]
        %v628 = vld [vmem:[%s4 + $0xd0] sm:$0xff]
        %v629 = vld [vmem:[%s4 + $0xd8] sm:$0xff]
        %v630 = vld [vmem:[%s4 + $0xe0] sm:$0xff]
        %v631 = vld [vmem:[%s4 + $0xe8] sm:$0xff]
        %v632 = vld [vmem:[%s4 + $0xf0] sm:$0xff]
        %v633 = vld [vmem:[%s4 + $0xf8] sm:$0xff]
        %v634 = vld [vmem:[%s4 + $0x100] sm:$0xff]
        %v635 = vld [vmem:[%s4 + $0x108] sm:$0xff]
        %v636 = vld [vmem:[%s4 + $0x110] sm:$0xff]
        %v637 = vld [vmem:[%s4 + $0x118] sm:$0xff]
        %v638 = vld [vmem:[%s4 + $0x120] sm:$0xff]
        %v639 = vld [vmem:[%s4 + $0x128] sm:$0xff]
        %v640 = vld [vmem:[%s4 + $0x130] sm:$0xff]
        %v641 = vld [vmem:[%s4 + $0x138] sm:$0xff]
        %v642 = vld [vmem:[%s4 + $0x140] sm:$0xff]
        %v643 = vld [vmem:[%s4 + $0x148] sm:$0xff]
        %v644 = vld [vmem:[%s4 + $0x150] sm:$0xff]
        %v645 = vld [vmem:[%s4 + $0x158] sm:$0xff]
        %v646 = vld [vmem:[%s4 + $0x160] sm:$0xff]
        %v647 = vld [vmem:[%s4 + $0x168] sm:$0xff]
        %v648 = vld [vmem:[%s4 + $0x170] sm:$0xff]
        %v649 = vld [vmem:[%s4 + $0x178] sm:$0xff]
        %v650 = vld [vmem:[%s4 + $0x180] sm:$0xff]
        %v651 = vld [vmem:[%s4 + $0x188] sm:$0xff]
        %v652 = vld [vmem:[%s4 + $0x190] sm:$0xff]
        %v653 = vld [vmem:[%s4 + $0x198] sm:$0xff]
        %v654 = vld [vmem:[%s4 + $0x1a0] sm:$0xff]
        %v655 = vld [vmem:[%s4 + $0x1a8] sm:$0xff]
        %v656 = vld [vmem:[%s4 + $0x1b0] sm:$0xff]
        %v657 = vld [vmem:[%s4 + $0x1b8] sm:$0xff]
        %v658 = vld [vmem:[%s4 + $0x1c0] sm:$0xff]
        %v659 = vld [vmem:[%s4 + $0x1c8] sm:$0xff]
        %v660 = vld [vmem:[%s4 + $0x1d0] sm:$0xff]
        %v661 = vld [vmem:[%s4 + $0x1d8] sm:$0xff]
        %v662 = vld [vmem:[%s4 + $0x1e0] sm:$0xff]
        %v663 = vld [vmem:[%s4 + $0x1e8] sm:$0xff]
        %v664 = vld [vmem:[%s4 + $0x1f0] sm:$0xff]
        %v665 = vld [vmem:[%s4 + $0x1f8] sm:$0xff]
        %v666 = vld [vmem:[%s5] sm:$0x3]
        %v668 = vperm.slane %v666, 0
        %v669 = vperm.slane %v666, 1
        %672 = vmatpush.msra.mxu0 %v632
        %673 = vmatpush.msra.mxu0 %v630
        %674 = vmatpush.msra.mxu0 %v628
        %675 = vmatpush.msra.mxu0 %v626
        %676 = vmatpush.msra.mxu0 %v624
        %677 = vmatpush.msra.mxu0 %v622
        %678 = vmatpush.msra.mxu0 %v620
        %679 = vmatpush.msra.mxu0 %v618
        %680 = vmatpush.msra.mxu0 %v616
        %681 = vmatpush.msra.mxu0 %v614
        %682 = vmatpush.msra.mxu0 %v612
        %683 = vmatpush.msra.mxu0 %v610
        %684 = vmatpush.msra.mxu0 %v608
        %685 = vmatpush.msra.mxu0 %v606
        %686 = vmatpush.msra.mxu0 %v604
        %687 = vmatpush.msra.mxu0 %v602
        %688 = vmatmul.f32.gmra.mxu0 %v600
        %v689 = vpop.f32.mrf.mxu0
        %v690 = vadd.f32 %v668, %v689
        %691 = vdwg.mxu0
        %692 = vmatpush.msra.mxu0 %v664
        %693 = vmatpush.msra.mxu0 %v662
        %694 = vmatpush.msra.mxu0 %v660
        %695 = vmatpush.msra.mxu0 %v658
        %696 = vmatpush.msra.mxu0 %v656
        %697 = vmatpush.msra.mxu0 %v654
        %698 = vmatpush.msra.mxu0 %v652
        %699 = vmatpush.msra.mxu0 %v650
        %700 = vmatpush.msra.mxu0 %v648
        %701 = vmatpush.msra.mxu0 %v646
        %702 = vmatpush.msra.mxu0 %v644
        %703 = vmatpush.msra.mxu0 %v642
        %704 = vmatpush.msra.mxu0 %v640
        %705 = vmatpush.msra.mxu0 %v638
        %706 = vmatpush.msra.mxu0 %v636
        %707 = vmatpush.msra.mxu0 %v634
        %708 = vmatmul.f32.gmra.mxu0 %v601
        %v709 = vpop.f32.mrf.mxu0
        %v710 = vadd.f32 %v690, %v709
        %711 = vdwg.mxu0
        %712 = vmatpush.msra.mxu0 %v633
        %713 = vmatpush.msra.mxu0 %v631
        %714 = vmatpush.msra.mxu0 %v629
        %715 = vmatpush.msra.mxu0 %v627
        %716 = vmatpush.msra.mxu0 %v625
        %717 = vmatpush.msra.mxu0 %v623
        %718 = vmatpush.msra.mxu0 %v621
        %719 = vmatpush.msra.mxu0 %v619
        %720 = vmatpush.msra.mxu0 %v617
        %721 = vmatpush.msra.mxu0 %v615
        %722 = vmatpush.msra.mxu0 %v613
        %723 = vmatpush.msra.mxu0 %v611
        %724 = vmatpush.msra.mxu0 %v609
        %725 = vmatpush.msra.mxu0 %v607
        %726 = vmatpush.msra.mxu0 %v605
        %727 = vmatpush.msra.mxu0 %v603
        %728 = vmatmul.f32.gmra.mxu0 %v600
        %v729 = vpop.f32.mrf.mxu0
        %v730 = vadd.f32 %v669, %v729
        %731 = vdwg.mxu0
        %732 = vmatpush.msra.mxu0 %v665
        %733 = vmatpush.msra.mxu0 %v663
        %734 = vmatpush.msra.mxu0 %v661
        %735 = vmatpush.msra.mxu0 %v659
        %736 = vmatpush.msra.mxu0 %v657
        %737 = vmatpush.msra.mxu0 %v655
        %738 = vmatpush.msra.mxu0 %v653
        %739 = vmatpush.msra.mxu0 %v651
        %740 = vmatpush.msra.mxu0 %v649
        %741 = vmatpush.msra.mxu0 %v647
        %742 = vmatpush.msra.mxu0 %v645
        %743 = vmatpush.msra.mxu0 %v643
        %744 = vmatpush.msra.mxu0 %v641
        %745 = vmatpush.msra.mxu0 %v639
        %746 = vmatpush.msra.mxu0 %v637
        %747 = vmatpush.msra.mxu0 %v635
        %748 = vmatmul.f32.gmra.mxu0 %v601
        %v749 = vpop.f32.mrf.mxu0
        %v750 = vadd.f32 %v730, %v749
        %751 = vdwg.mxu0
        %v752 = vmul.f32 %v449, %v750
        %v753 = vadd.f32 %v710, %v752
        %v754 = vld [vmem:[%s6] sm:$0xff]
        %v755 = vld [vmem:[%s6 + $0x8] sm:$0xff]
        %v756 = vld [vmem:[%s6 + $0x10] sm:$0xff]
        %v757 = vld [vmem:[%s6 + $0x18] sm:$0xff]
        %v758 = vld [vmem:[%s6 + $0x20] sm:$0xff]
        %v759 = vld [vmem:[%s6 + $0x28] sm:$0xff]
        %v760 = vld [vmem:[%s6 + $0x30] sm:$0xff]
        %v761 = vld [vmem:[%s6 + $0x38] sm:$0xff]
        %v762 = vld [vmem:[%s6 + $0x40] sm:$0xff]
        %v763 = vld [vmem:[%s6 + $0x48] sm:$0xff]
        %v764 = vld [vmem:[%s6 + $0x50] sm:$0xff]
        %v765 = vld [vmem:[%s6 + $0x58] sm:$0xff]
        %v766 = vld [vmem:[%s6 + $0x60] sm:$0xff]
        %v767 = vld [vmem:[%s6 + $0x68] sm:$0xff]
        %v768 = vld [vmem:[%s6 + $0x70] sm:$0xff]
        %v769 = vld [vmem:[%s6 + $0x78] sm:$0xff]
        %v770 = vld [vmem:[%s6 + $0x80] sm:$0xff]
        %v771 = vld [vmem:[%s6 + $0x88] sm:$0xff]
        %v772 = vld [vmem:[%s6 + $0x90] sm:$0xff]
        %v773 = vld [vmem:[%s6 + $0x98] sm:$0xff]
        %v774 = vld [vmem:[%s6 + $0xa0] sm:$0xff]
        %v775 = vld [vmem:[%s6 + $0xa8] sm:$0xff]
        %v776 = vld [vmem:[%s6 + $0xb0] sm:$0xff]
        %v777 = vld [vmem:[%s6 + $0xb8] sm:$0xff]
        %v778 = vld [vmem:[%s6 + $0xc0] sm:$0xff]
        %v779 = vld [vmem:[%s6 + $0xc8] sm:$0xff]
        %v780 = vld [vmem:[%s6 + $0xd0] sm:$0xff]
        %v781 = vld [vmem:[%s6 + $0xd8] sm:$0xff]
        %v782 = vld [vmem:[%s6 + $0xe0] sm:$0xff]
        %v783 = vld [vmem:[%s6 + $0xe8] sm:$0xff]
        %v784 = vld [vmem:[%s6 + $0xf0] sm:$0xff]
        %v785 = vld [vmem:[%s6 + $0xf8] sm:$0xff]
        %v786 = vld [vmem:[%s7] sm:$0x3]
        %v788 = vperm.slane %v786, 0
        %v789 = vperm.slane %v786, 1
        %792 = vmatpush.msra.mxu0 %v784
        %793 = vmatpush.msra.mxu0 %v782
        %794 = vmatpush.msra.mxu0 %v780
        %795 = vmatpush.msra.mxu0 %v778
        %796 = vmatpush.msra.mxu0 %v776
        %797 = vmatpush.msra.mxu0 %v774
        %798 = vmatpush.msra.mxu0 %v772
        %799 = vmatpush.msra.mxu0 %v770
        %800 = vmatpush.msra.mxu0 %v768
        %801 = vmatpush.msra.mxu0 %v766
        %802 = vmatpush.msra.mxu0 %v764
        %803 = vmatpush.msra.mxu0 %v762
        %804 = vmatpush.msra.mxu0 %v760
        %805 = vmatpush.msra.mxu0 %v758
        %806 = vmatpush.msra.mxu0 %v756
        %807 = vmatpush.msra.mxu0 %v754
        %808 = vmatmul.f32.gmra.mxu0 %v753
        %v809 = vpop.f32.mrf.mxu0
        %v810 = vadd.f32 %v788, %v809
        %811 = vdwg.mxu0
        %812 = vmatpush.msra.mxu0 %v785
        %813 = vmatpush.msra.mxu0 %v783
        %814 = vmatpush.msra.mxu0 %v781
        %815 = vmatpush.msra.mxu0 %v779
        %816 = vmatpush.msra.mxu0 %v777
        %817 = vmatpush.msra.mxu0 %v775
        %818 = vmatpush.msra.mxu0 %v773
        %819 = vmatpush.msra.mxu0 %v771
        %820 = vmatpush.msra.mxu0 %v769
        %821 = vmatpush.msra.mxu0 %v767
        %822 = vmatpush.msra.mxu0 %v765
        %823 = vmatpush.msra.mxu0 %v763
        %824 = vmatpush.msra.mxu0 %v761
        %825 = vmatpush.msra.mxu0 %v759
        %826 = vmatpush.msra.mxu0 %v757
        %827 = vmatpush.msra.mxu0 %v755
        %828 = vmatmul.f32.gmra.mxu0 %v753
        %v829 = vpop.f32.mrf.mxu0
        %v830 = vadd.f32 %v789, %v829
        %831 = vdwg.mxu0
        %v832 = vmax.f32 %v810, 0.0
        %v833 = vmax.f32 %v830, 0.0
        %v834 = vld [vmem:[%s8] sm:$0xff]
        %v835 = vld [vmem:[%s8 + $0x8] sm:$0xff]
        %v836 = vld [vmem:[%s8 + $0x10] sm:$0xff]
        %v837 = vld [vmem:[%s8 + $0x18] sm:$0xff]
        %v838 = vld [vmem:[%s8 + $0x20] sm:$0xff]
        %v839 = vld [vmem:[%s8 + $0x28] sm:$0xff]
        %v840 = vld [vmem:[%s8 + $0x30] sm:$0xff]
        %v841 = vld [vmem:[%s8 + $0x38] sm:$0xff]
        %v842 = vld [vmem:[%s8 + $0x40] sm:$0xff]
        %v843 = vld [vmem:[%s8 + $0x48] sm:$0xff]
        %v844 = vld [vmem:[%s8 + $0x50] sm:$0xff]
        %v845 = vld [vmem:[%s8 + $0x58] sm:$0xff]
        %v846 = vld [vmem:[%s8 + $0x60] sm:$0xff]
        %v847 = vld [vmem:[%s8 + $0x68] sm:$0xff]
        %v848 = vld [vmem:[%s8 + $0x70] sm:$0xff]
        %v849 = vld [vmem:[%s8 + $0x78] sm:$0xff]
        %v850 = vld [vmem:[%s8 + $0x80] sm:$0xff]
        %v851 = vld [vmem:[%s8 + $0x88] sm:$0xff]
        %v852 = vld [vmem:[%s8 + $0x90] sm:$0xff]
        %v853 = vld [vmem:[%s8 + $0x98] sm:$0xff]
        %v854 = vld [vmem:[%s8 + $0xa0] sm:$0xff]
        %v855 = vld [vmem:[%s8 + $0xa8] sm:$0xff]
        %v856 = vld [vmem:[%s8 + $0xb0] sm:$0xff]
        %v857 = vld [vmem:[%s8 + $0xb8] sm:$0xff]
        %v858 = vld [vmem:[%s8 + $0xc0] sm:$0xff]
        %v859 = vld [vmem:[%s8 + $0xc8] sm:$0xff]
        %v860 = vld [vmem:[%s8 + $0xd0] sm:$0xff]
        %v861 = vld [vmem:[%s8 + $0xd8] sm:$0xff]
        %v862 = vld [vmem:[%s8 + $0xe0] sm:$0xff]
        %v863 = vld [vmem:[%s8 + $0xe8] sm:$0xff]
        %v864 = vld [vmem:[%s8 + $0xf0] sm:$0xff]
        %v865 = vld [vmem:[%s8 + $0xf8] sm:$0xff]
        %v866 = vld [vmem:[%s8 + $0x100] sm:$0xff]
        %v867 = vld [vmem:[%s8 + $0x108] sm:$0xff]
        %v868 = vld [vmem:[%s8 + $0x110] sm:$0xff]
        %v869 = vld [vmem:[%s8 + $0x118] sm:$0xff]
        %v870 = vld [vmem:[%s8 + $0x120] sm:$0xff]
        %v871 = vld [vmem:[%s8 + $0x128] sm:$0xff]
        %v872 = vld [vmem:[%s8 + $0x130] sm:$0xff]
        %v873 = vld [vmem:[%s8 + $0x138] sm:$0xff]
        %v874 = vld [vmem:[%s8 + $0x140] sm:$0xff]
        %v875 = vld [vmem:[%s8 + $0x148] sm:$0xff]
        %v876 = vld [vmem:[%s8 + $0x150] sm:$0xff]
        %v877 = vld [vmem:[%s8 + $0x158] sm:$0xff]
        %v878 = vld [vmem:[%s8 + $0x160] sm:$0xff]
        %v879 = vld [vmem:[%s8 + $0x168] sm:$0xff]
        %v880 = vld [vmem:[%s8 + $0x170] sm:$0xff]
        %v881 = vld [vmem:[%s8 + $0x178] sm:$0xff]
        %v882 = vld [vmem:[%s8 + $0x180] sm:$0xff]
        %v883 = vld [vmem:[%s8 + $0x188] sm:$0xff]
        %v884 = vld [vmem:[%s8 + $0x190] sm:$0xff]
        %v885 = vld [vmem:[%s8 + $0x198] sm:$0xff]
        %v886 = vld [vmem:[%s8 + $0x1a0] sm:$0xff]
        %v887 = vld [vmem:[%s8 + $0x1a8] sm:$0xff]
        %v888 = vld [vmem:[%s8 + $0x1b0] sm:$0xff]
        %v889 = vld [vmem:[%s8 + $0x1b8] sm:$0xff]
        %v890 = vld [vmem:[%s8 + $0x1c0] sm:$0xff]
        %v891 = vld [vmem:[%s8 + $0x1c8] sm:$0xff]
        %v892 = vld [vmem:[%s8 + $0x1d0] sm:$0xff]
        %v893 = vld [vmem:[%s8 + $0x1d8] sm:$0xff]
        %v894 = vld [vmem:[%s8 + $0x1e0] sm:$0xff]
        %v895 = vld [vmem:[%s8 + $0x1e8] sm:$0xff]
        %v896 = vld [vmem:[%s8 + $0x1f0] sm:$0xff]
        %v897 = vld [vmem:[%s8 + $0x1f8] sm:$0xff]
        %v898 = vld [vmem:[%s9] sm:$0x3]
        %v900 = vperm.slane %v898, 0
        %v901 = vperm.slane %v898, 1
        %904 = vmatpush.msra.mxu0 %v864
        %905 = vmatpush.msra.mxu0 %v862
        %906 = vmatpush.msra.mxu0 %v860
        %907 = vmatpush.msra.mxu0 %v858
        %908 = vmatpush.msra.mxu0 %v856
        %909 = vmatpush.msra.mxu0 %v854
        %910 = vmatpush.msra.mxu0 %v852
        %911 = vmatpush.msra.mxu0 %v850
        %912 = vmatpush.msra.mxu0 %v848
        %913 = vmatpush.msra.mxu0 %v846
        %914 = vmatpush.msra.mxu0 %v844
        %915 = vmatpush.msra.mxu0 %v842
        %916 = vmatpush.msra.mxu0 %v840
        %917 = vmatpush.msra.mxu0 %v838
        %918 = vmatpush.msra.mxu0 %v836
        %919 = vmatpush.msra.mxu0 %v834
        %920 = vmatmul.f32.gmra.mxu0 %v832
        %v921 = vpop.f32.mrf.mxu0
        %v922 = vadd.f32 %v900, %v921
        %923 = vdwg.mxu0
        %924 = vmatpush.msra.mxu0 %v896
        %925 = vmatpush.msra.mxu0 %v894
        %926 = vmatpush.msra.mxu0 %v892
        %927 = vmatpush.msra.mxu0 %v890
        %928 = vmatpush.msra.mxu0 %v888
        %929 = vmatpush.msra.mxu0 %v886
        %930 = vmatpush.msra.mxu0 %v884
        %931 = vmatpush.msra.mxu0 %v882
        %932 = vmatpush.msra.mxu0 %v880
        %933 = vmatpush.msra.mxu0 %v878
        %934 = vmatpush.msra.mxu0 %v876
        %935 = vmatpush.msra.mxu0 %v874
        %936 = vmatpush.msra.mxu0 %v872
        %937 = vmatpush.msra.mxu0 %v870
        %938 = vmatpush.msra.mxu0 %v868
        %939 = vmatpush.msra.mxu0 %v866
        %940 = vmatmul.f32.gmra.mxu0 %v833
        %v941 = vpop.f32.mrf.mxu0
        %v942 = vadd.f32 %v922, %v941
        %943 = vdwg.mxu0
        %944 = vmatpush.msra.mxu0 %v865
        %945 = vmatpush.msra.mxu0 %v863
        %946 = vmatpush.msra.mxu0 %v861
        %947 = vmatpush.msra.mxu0 %v859
        %948 = vmatpush.msra.mxu0 %v857
        %949 = vmatpush.msra.mxu0 %v855
        %950 = vmatpush.msra.mxu0 %v853
        %951 = vmatpush.msra.mxu0 %v851
        %952 = vmatpush.msra.mxu0 %v849
        %953 = vmatpush.msra.mxu0 %v847
        %954 = vmatpush.msra.mxu0 %v845
        %955 = vmatpush.msra.mxu0 %v843
        %956 = vmatpush.msra.mxu0 %v841
        %957 = vmatpush.msra.mxu0 %v839
        %958 = vmatpush.msra.mxu0 %v837
        %959 = vmatpush.msra.mxu0 %v835
        %960 = vmatmul.f32.gmra.mxu0 %v832
        %v961 = vpop.f32.mrf.mxu0
        %v962 = vadd.f32 %v901, %v961
        %963 = vdwg.mxu0
        %964 = vmatpush.msra.mxu0 %v897
        %965 = vmatpush.msra.mxu0 %v895
        %966 = vmatpush.msra.mxu0 %v893
        %967 = vmatpush.msra.mxu0 %v891
        %968 = vmatpush.msra.mxu0 %v889
        %969 = vmatpush.msra.mxu0 %v887
        %970 = vmatpush.msra.mxu0 %v885
        %971 = vmatpush.msra.mxu0 %v883
        %972 = vmatpush.msra.mxu0 %v881
        %973 = vmatpush.msra.mxu0 %v879
        %974 = vmatpush.msra.mxu0 %v877
        %975 = vmatpush.msra.mxu0 %v875
        %976 = vmatpush.msra.mxu0 %v873
        %977 = vmatpush.msra.mxu0 %v871
        %978 = vmatpush.msra.mxu0 %v869
        %979 = vmatpush.msra.mxu0 %v867
        %980 = vmatmul.f32.gmra.mxu0 %v833
        %v981 = vpop.f32.mrf.mxu0
        %v982 = vadd.f32 %v962, %v981
        %983 = vdwg.mxu0
        %v984 = vxor.u32 %v942, 2147483648
        %v985 = vxor.u32 %v982, 2147483648
        %v986 = vmul.f32 %v984, 1.442695
        %v987 = vpow.pop %v986
        %v988 = vmul.f32 %v985, 1.442695
        %v989 = vpow.pop %v988
        %v990 = vadd.f32 %v987, 1.0
        %v991 = vadd.f32 %v989, 1.0
        %v992 = vrcp.pop %v990
        %v993 = vmul.f32 %v990, %v992
        %v994 = vsub.f32 1.0, %v993
        %v995 = vmul.f32 %v992, %v994
        %v996 = vadd.f32 %v992, %v995
        %vm997 = vweird.f32 %v990
        %vm998 = vweird.f32 %v992
        %vm999 = vmor %vm997, %vm998
        %v1000 = vsel %vm999, %v992, %v996
        %v1001 = vand.u32 2147483647, %v990
        %vm1002 = vcmp.eq.f32.partialorder %v1001, 8.507059e+37
        %v1003 = vand.u32 %v990, 2147483648
        %v1004 = vor.u32 1.1754944e-38, %v1003
        %v1005 = vsel %vm1002, %v1004, %v1000
        %v1006 = vmul.f32 1.0, %v1005
        %v1007 = vrcp.pop %v991
        %v1008 = vmul.f32 %v991, %v1007
        %v1009 = vsub.f32 1.0, %v1008
        %v1010 = vmul.f32 %v1007, %v1009
        %v1011 = vadd.f32 %v1007, %v1010
        %vm1012 = vweird.f32 %v991
        %vm1013 = vweird.f32 %v1007
        %vm1014 = vmor %vm1012, %vm1013
        %v1015 = vsel %vm1014, %v1007, %v1011
        %v1016 = vand.u32 2147483647, %v991
        %vm1017 = vcmp.eq.f32.partialorder %v1016, 8.507059e+37
        %v1018 = vand.u32 %v991, 2147483648
        %v1019 = vor.u32 1.1754944e-38, %v1018
        %v1020 = vsel %vm1017, %v1019, %v1015
        %v1021 = vmul.f32 1.0, %v1020
        %1022 = vst [vmem:[%s423] sm:$0xff] %v1006
        %1023 = vst [vmem:[%s423 + $0x8] sm:$0xff] %v1021
        %1024 = vst [vmem:[%s430] sm:$0xff] %v710
        %1025 = vst [vmem:[%s437] sm:$0xff] %v750
        %s1026 = sand.u32 %s258, 1
        %s1027 = scalar_lea.sflag [#allocation3], %s1026
        %s1028 = sand.u32 %s258, 1
        %s1029 = smul.addr %s1028, 16
        %s1030 = scalar_lea.vmem [#allocation2], %s1029
        %s1031 = sand.u32 %s30, 1
        %s1032 = scalar_lea.sflag [#allocation5], %s1031
        %s1033 = sand.u32 %s284, 1
        %s1034 = smul.addr %s1033, 8
        %s1035 = scalar_lea.vmem [#allocation4], %s1034
        %s1036 = sand.u32 %s30, 1
        %s1037 = scalar_lea.sflag [#allocation5], %s1036
        %s1038 = sand.u32 %s310, 1
        %s1039 = smul.addr %s1038, 8
        %s1040 = scalar_lea.vmem [#allocation6], %s1039
        // Predicated region
        $region61: #{vae_forward.1} parent=59 // pred_check
          %p1041 = pneg %p268
        $region62: #{vae_forward.1} parent=59 // pred_check_branch
          %1043 = sbr.rel (%p1041) target = $region64
        $region63: #{vae_forward.1} parent=59 // pred_region
          %1045 = vsyncadd %s1027, 0
          %s1046 = smul.addr %s30, 2
          %s1047 = smul.addr %s1046, 8
          %s1048 = scalar_lea.hbm %s10, %s1047
          %s1050 = sshll.u32 %s1030, 4
          %s1051 = int_to_ptr.vmem [resolvable:$true] %s1050
          %s1052 = sshll.u32 %s1048, 4
          %s1053 = int_to_ptr.hbm [resolvable:$true] %s1052
          %1055 = dma.vmem_to_hbm [thread:$0]  %s1051, 256, %s1053, %s1027
        $region64: #{vae_forward.1} parent=59 // pred_fallthru
          _
        // Predicated region
        $region65: #{vae_forward.1} parent=59 // pred_check
          %p1056 = pneg %p294
        $region66: #{vae_forward.1} parent=59 // pred_check_branch
          %1058 = sbr.rel (%p1056) target = $region68
        $region67: #{vae_forward.1} parent=59 // pred_region
          %1060 = vsyncadd %s1032, 0
          %s1061 = smul.addr %s30, 8
          %s1062 = scalar_lea.hbm %s11, %s1061
          %s1064 = sshll.u32 %s1035, 4
          %s1065 = int_to_ptr.vmem [resolvable:$true] %s1064
          %s1066 = sshll.u32 %s1062, 4
          %s1067 = int_to_ptr.hbm [resolvable:$true] %s1066
          %1069 = dma.vmem_to_hbm [thread:$0]  %s1065, 128, %s1067, %s1032
        $region68: #{vae_forward.1} parent=59 // pred_fallthru
          _
        // Predicated region
        $region69: #{vae_forward.1} parent=59 // pred_check
          %p1070 = pneg %p320
        $region70: #{vae_forward.1} parent=59 // pred_check_branch
          %1072 = sbr.rel (%p1070) target = $region72
        $region71: #{vae_forward.1} parent=59 // pred_region
          %1074 = vsyncadd %s1037, 0
          %s1075 = smul.addr %s30, 8
          %s1076 = scalar_lea.hbm %s12, %s1075
          %s1078 = sshll.u32 %s1040, 4
          %s1079 = int_to_ptr.vmem [resolvable:$true] %s1078
          %s1080 = sshll.u32 %s1076, 4
          %s1081 = int_to_ptr.hbm [resolvable:$true] %s1080
          %1083 = dma.vmem_to_hbm [thread:$0]  %s1079, 128, %s1081, %s1037
        $region72: #{vae_forward.1} parent=59 // pred_fallthru
          _
      $region60: #{vae_forward.1} parent=5 // pred_fallthru
        _
      %p1084 = scmp.le.s32.totalorder 2, %s25
      // Predicated region
      $region73: #{vae_forward.1} parent=5 // pred_check
        %p1085 = pneg %p1084
      $region74: #{vae_forward.1} parent=5 // pred_check_branch
        %1087 = sbr.rel (%p1085) target = $region76
      $region75: #{vae_forward.1} parent=5 // pred_region
        %s1088 = ssub.s32 %s25, 2
        // Predicated region
        $region77: #{vae_forward.1} parent=75 // pred_check
          %p1089 = pneg %p274
        $region78: #{vae_forward.1} parent=75 // pred_check_branch
          %1091 = sbr.rel (%p1089) target = $region80
        $region79: #{vae_forward.1} parent=75 // pred_region
          %s1092 = sand.u32 %s259, 1
          %s1093 = scalar_lea.sflag [#allocation3], %s1092
          %s1094 = sand.u32 %s259, 1
          %s1095 = smul.addr %s1094, 16
          %s1096 = scalar_lea.vmem [#allocation2], %s1095
          %1098 = dma.done %s1093, 256
        $region80: #{vae_forward.1} parent=75 // pred_fallthru
          _
        // Predicated region
        $region81: #{vae_forward.1} parent=75 // pred_check
          %p1099 = pneg %p300
        $region82: #{vae_forward.1} parent=75 // pred_check_branch
          %1101 = sbr.rel (%p1099) target = $region84
        $region83: #{vae_forward.1} parent=75 // pred_region
          %s1102 = sand.u32 %s31, 1
          %s1103 = scalar_lea.sflag [#allocation5], %s1102
          %s1104 = sand.u32 %s285, 1
          %s1105 = smul.addr %s1104, 8
          %s1106 = scalar_lea.vmem [#allocation4], %s1105
          %1108 = dma.done %s1103, 128
        $region84: #{vae_forward.1} parent=75 // pred_fallthru
          _
        // Predicated region
        $region85: #{vae_forward.1} parent=75 // pred_check
          %p1109 = pneg %p326
        $region86: #{vae_forward.1} parent=75 // pred_check_branch
          %1111 = sbr.rel (%p1109) target = $region88
        $region87: #{vae_forward.1} parent=75 // pred_region
          %s1112 = sand.u32 %s31, 1
          %s1113 = scalar_lea.sflag [#allocation5], %s1112
          %s1114 = sand.u32 %s311, 1
          %s1115 = smul.addr %s1114, 8
          %s1116 = scalar_lea.vmem [#allocation6], %s1115
          %1118 = dma.done %s1113, 128
        $region88: #{vae_forward.1} parent=75 // pred_fallthru
          _
      $region76: #{vae_forward.1} parent=5 // pred_fallthru
        _
    $region6: #{vae_forward.1} parent=1 // loop_footer
      %s29 = sadd.s32 1, %s25
    $region7: #{vae_forward.1} parent=1 // loop_footer_branch
      %24 = sbr.rel target = $region3
    $region8: #{vae_forward.1} parent=1 // loop_exit
      _
    %1119 = vsyncpa [#allocation3], 1
    %s1120 = scalar_lea.sflag [#allocation3], 1
    %1121 = vsyncpa %s1120, 1
    %1122 = vsyncpa [#allocation5], 1
    %s1123 = scalar_lea.sflag [#allocation5], 1
    %1124 = vsyncpa %s1123, 1

</llo_original>
